<compile_context>
chip_gen: v6e
topology: v6e:2x2x1
jax: 0.10.0
libtpu: 0.0.40
codegen_flags: <defaults>
</compile_context>

<pallas_src>
import jax
import jax.numpy as jnp
from jax.experimental import pallas as pl
from jax.experimental.pallas import tpu as pltpu

IN_DIM = 52
HID = 32
EPS = 1e-5
NEG_SLOPE = 0.01
LANE = 128


def _round_up(n, m):
    return ((n + m - 1) // m) * m


def sclassifier_forward(x, params, *, tile_b=None):
    """x: (B, IN_DIM) float32.  Returns (B, output_dim) float32."""
    (w1, b1, g1, be1, w2, b2, g2, be2, w3, b3) = params
    del b1, b2  # cancelled exactly by BN's batch-mean subtraction (train mode)

    B = x.shape[0]
    out_dim = w3.shape[1]
    out_pad = _round_up(out_dim, LANE)       # lane-dense store path

    # Batch tile: sublane-aligned, pipelined by BlockSpec.  Bigger tiles
    # amortize per-grid-step overhead; caches (not tiles) bound VMEM.
    if tile_b is None:
        tile_b = min(_round_up(B, 8), 8192)
    tile_b = max(8, _round_up(tile_b, 8))
    nb = pl.cdiv(B, tile_b)
    b_pad = nb * tile_b
    padded = b_pad != B
    inv_n = 1.0 / float(B)

    # Tiny params: one-time wrapper casts / pads (negligible traffic).
    w1b = w1.astype(jnp.bfloat16)
    w2b = w2.astype(jnp.bfloat16)
    w3b = jnp.pad(w3.astype(jnp.bfloat16), ((0, 0), (0, out_pad - out_dim)))
    b3p = jnp.pad(b3, ((0, 0), (0, out_pad - out_dim)))

    def kernel(x_ref, w1_ref, g1_ref, be1_ref, w2_ref, g2_ref, be2_ref,
               w3_ref, b3_ref, out_ref, s1, q1, s2, q2, h1c, h2c):
        phase = pl.program_id(0)
        tile = pl.program_id(1)
        row0 = pl.multiple_of(tile * tile_b, tile_b)

        if padded:
            rows = tile * tile_b + jax.lax.broadcasted_iota(jnp.int32, (tile_b, 1), 0)
            valid = rows < B

        def mask_rows(h):
            # Last tile may read past the end of x (undefined values); zero
            # those rows so they never pollute the batch statistics.
            return jnp.where(valid, h, 0.0) if padded else h

        # ---- phase 0: h1 = x @ W1 ; cache ; accumulate layer-1 stats --------
        @pl.when(phase == 0)
        def _phase0():
            @pl.when(tile == 0)
            def _init():
                s1[...] = jnp.zeros_like(s1)
                q1[...] = jnp.zeros_like(q1)
                s2[...] = jnp.zeros_like(s2)
                q2[...] = jnp.zeros_like(q2)

            h1 = jnp.dot(x_ref[...].astype(jnp.bfloat16), w1_ref[...],
                         preferred_element_type=jnp.float32)
            h1 = mask_rows(h1)
            h1c[pl.ds(row0, tile_b), :] = h1
            s1[...] += jnp.sum(h1, axis=0, keepdims=True)
            q1[...] += jnp.sum(h1 * h1, axis=0, keepdims=True)

        # ---- phase 1: BN1 + LeakyReLU ; h2 = a1 @ W2 ; cache ; stats --------
        @pl.when(phase == 1)
        def _phase1():
            @pl.when(tile == 0)
            def _fold1():   # (sum, sumsq) -> (scale, shift), in place, once
                mean = s1[...] * inv_n
                var = jnp.maximum(q1[...] * inv_n - mean * mean, 0.0)
                scale = g1_ref[...] * jax.lax.rsqrt(var + EPS)
                s1[...] = scale
                q1[...] = be1_ref[...] - mean * scale

            h1 = h1c[pl.ds(row0, tile_b), :]
            a1 = h1 * s1[...] + q1[...]          # folded BN: one mul + one add
            a1 = jnp.where(a1 > 0, a1, NEG_SLOPE * a1)
            h2 = jnp.dot(a1.astype(jnp.bfloat16), w2_ref[...],
                         preferred_element_type=jnp.float32)
            h2 = mask_rows(h2)  # shift1 makes padded rows nonzero -> re-mask
            h2c[pl.ds(row0, tile_b), :] = h2
            s2[...] += jnp.sum(h2, axis=0, keepdims=True)
            q2[...] += jnp.sum(h2 * h2, axis=0, keepdims=True)

        # ---- phase 2: BN2 + LeakyReLU ; head matmul ; store ------------------
        @pl.when(phase == 2)
        def _phase2():
            @pl.when(tile == 0)
            def _fold2():
                mean = s2[...] * inv_n
                var = jnp.maximum(q2[...] * inv_n - mean * mean, 0.0)
                scale = g2_ref[...] * jax.lax.rsqrt(var + EPS)
                s2[...] = scale
                q2[...] = be2_ref[...] - mean * scale

            h2 = h2c[pl.ds(row0, tile_b), :]
            a2 = h2 * s2[...] + q2[...]
            a2 = jnp.where(a2 > 0, a2, NEG_SLOPE * a2)
            out = jnp.dot(a2.astype(jnp.bfloat16), w3_ref[...],
                          preferred_element_type=jnp.float32) + b3_ref[...]
            out_ref[...] = out.astype(out_ref.dtype)

    # x is only consumed in phase 0: park its block index during phases 1/2 so
    # each x tile is DMA'd from HBM exactly once.
    x_spec = pl.BlockSpec((tile_b, IN_DIM),
                          lambda p, b: (jnp.where(p == 0, b, nb - 1), 0))
    # out is only produced in phase 2: park on block 0 until then so no
    # garbage/zero blocks are ever flushed to HBM, and each block is written
    # back exactly once with real data.
    out_spec = pl.BlockSpec((tile_b, out_pad),
                            lambda p, b: (jnp.where(p == 2, b, 0), 0))

    def full(a):   # whole-array resident blocks for the tiny params
        return pl.BlockSpec(a.shape, lambda p, b: (0, 0))

    param_args = (w1b, g1, be1, w2b, g2, be2, w3b, b3p)

    grid_spec = pltpu.PrefetchScalarGridSpec(
        num_scalar_prefetch=0,
        grid=(3, nb),
        in_specs=[x_spec] + [full(a) for a in param_args],
        out_specs=out_spec,
        scratch_shapes=[pltpu.VMEM((1, HID), jnp.float32)] * 4      # stats/fold
                       + [pltpu.VMEM((b_pad, HID), jnp.float32)] * 2,  # h1/h2
    )

    # VMEM footprint (physical: last dim padded to 128 lanes):
    #   full-batch h1/h2 caches + double-buffered x / out tiles + tiny params.
    # TODO(synk): spill h1/h2 caches to an HBM scratch via make_async_copy when
    # b_pad is too large for them to stay resident in VMEM.
    cache_bytes = 2 * b_pad * LANE * 4
    stream_bytes = 2 * tile_b * LANE * 4 * 2
    vmem_limit = int(max(32 << 20,
                         min(cache_bytes + stream_bytes + (4 << 20), 100 << 20)))

    out_padded = pl.pallas_call(
        kernel,
        out_shape=jax.ShapeDtypeStruct((B, out_pad), jnp.float32),
        grid_spec=grid_spec,
        compiler_params=pltpu.CompilerParams(
            # Phase axis is sequential; batch tiles share the stats/cache
            # scratch so they cannot be megacore-split as written.
            # TODO(synk): v7x dual-TC variant (per-core partial stats combined
            # via VMEM_SHARED + core_barrier) not implemented.
            dimension_semantics=("arbitrary", "arbitrary"),
            vmem_limit_bytes=vmem_limit,
        ),
    )(x, *param_args)

    return out_padded[:, :out_dim]


def init_params(key, output_dim):
    """Deterministic init matching the PyTorch layer shapes.
    Linear weights stored transposed: (in_features, out_features)."""
    ks = jax.random.split(key, 6)

    def linear(k, fan_in, fan_out):
        kw, kb = jax.random.split(k)
        bound = 1.0 / (fan_in ** 0.5)
        w = jax.random.uniform(kw, (fan_in, fan_out), jnp.float32, -bound, bound)
        b = jax.random.uniform(kb, (1, fan_out), jnp.float32, -bound, bound)
        return w, b

    w1, b1 = linear(ks[0], IN_DIM, HID)
    w2, b2 = linear(ks[1], HID, HID)
    w3, b3 = linear(ks[2], HID, output_dim)

    g1 = 1.0 + 0.1 * jax.random.normal(ks[3], (1, HID), jnp.float32)
    be1 = 0.1 * jax.random.normal(ks[4], (1, HID), jnp.float32)
    g2 = 1.0 + 0.1 * jax.random.normal(ks[5], (1, HID), jnp.float32)
    be2 = jnp.zeros((1, HID), jnp.float32)

    return (w1, b1, g1, be1, w2, b2, g2, be2, w3, b3)


def reference_forward(x, params, *, mirror_kernel=True):
    """Pure-JAX reference.
    mirror_kernel=True  -> same numerics as the kernel (bf16 MXU operands,
                           f32 accumulate, pre-BN biases dropped).
    mirror_kernel=False -> straight f32 PyTorch training-mode semantics."""
    (w1, b1, g1, be1, w2, b2, g2, be2, w3, b3) = params

    def bn(h, g, b):
        m = jnp.mean(h, axis=0, keepdims=True)
        v = jnp.mean((h - m) ** 2, axis=0, keepdims=True)
        return (h - m) / jnp.sqrt(v + EPS) * g + b

    lrelu = lambda h: jnp.where(h > 0, h, NEG_SLOPE * h)

    if mirror_kernel:
        dot = lambda a, w: jnp.dot(a.astype(jnp.bfloat16), w.astype(jnp.bfloat16),
                                   preferred_element_type=jnp.float32)
        h = lrelu(bn(dot(x, w1), g1, be1))
        h = lrelu(bn(dot(h, w2), g2, be2))
        return dot(h, w3) + b3
    else:
        h = lrelu(bn(x @ w1 + b1, g1, be1))
        h = lrelu(bn(h @ w2 + b2, g2, be2))
        return h @ w3 + b3


if __name__ == "__main__":
    key = jax.random.PRNGKey(0)
    k_x, k_p = jax.random.split(key)

    B = 8
    OUTPUT_DIM = 4
    x = jax.random.normal(k_x, (B, IN_DIM), jnp.float32)
    params = init_params(k_p, OUTPUT_DIM)

    # ---- small single-tile case ----
    out = jax.block_until_ready(sclassifier_forward(x, params))
    assert out.shape == (B, OUTPUT_DIM)
    ref_mirror = reference_forward(x, params, mirror_kernel=True)
    ref_f32 = reference_forward(x, params, mirror_kernel=False)
    assert jnp.allclose(out, ref_mirror, atol=1e-3, rtol=1e-3), "mismatch vs bf16 reference"
    # bf16 MXU operands + dropped (cancelled) pre-BN biases vs pure-f32 PyTorch math:
    assert jnp.allclose(out, ref_f32, atol=5e-2, rtol=5e-2), "mismatch vs f32 reference"

    # ---- multi-tile + ragged-tail case (exercises tiled full-batch BN stats,
    #      in-kernel masking of the partial last tile, and the h1/h2 caches) ----
    B2 = 200
    x2 = jax.random.normal(jax.random.PRNGKey(1), (B2, IN_DIM), jnp.float32)
    out2 = jax.block_until_ready(sclassifier_forward(x2, params, tile_b=64))
    ref2 = reference_forward(x2, params, mirror_kernel=True)
    assert out2.shape == (B2, OUTPUT_DIM)
    assert jnp.allclose(out2, ref2, atol=1e-3, rtol=1e-3), "mismatch vs reference (tiled)"

    print("KERNEL_OK")
</pallas_src>

<mosaic_0001>
module attributes {stable_mosaic.version = 11 : i64} {
  func.func @kernel(%arg0: i32, %arg1: i32, %arg2: memref<8x52xf32, #tpu.memory_space<vmem>>, %arg3: memref<52x32xbf16, #tpu.memory_space<vmem>>, %arg4: memref<1x32xf32, #tpu.memory_space<vmem>>, %arg5: memref<1x32xf32, #tpu.memory_space<vmem>>, %arg6: memref<32x32xbf16, #tpu.memory_space<vmem>>, %arg7: memref<1x32xf32, #tpu.memory_space<vmem>>, %arg8: memref<1x32xf32, #tpu.memory_space<vmem>>, %arg9: memref<32x128xbf16, #tpu.memory_space<vmem>>, %arg10: memref<1x128xf32, #tpu.memory_space<vmem>>, %arg11: memref<8x128xf32, #tpu.memory_space<vmem>>, %arg12: memref<1x32xf32, #tpu.memory_space<vmem>>, %arg13: memref<1x32xf32, #tpu.memory_space<vmem>>, %arg14: memref<1x32xf32, #tpu.memory_space<vmem>>, %arg15: memref<1x32xf32, #tpu.memory_space<vmem>>, %arg16: memref<8x32xf32, #tpu.memory_space<vmem>>, %arg17: memref<8x32xf32, #tpu.memory_space<vmem>>) attributes {dimension_semantics = [#tpu.dimension_semantics<arbitrary>, #tpu.dimension_semantics<arbitrary>], iteration_bounds = array<i64: 3, 1>, scalar_prefetch = 0 : i64, scratch_operands = 6 : i64, tpu.core_type = #tpu.core_type<tc>, window_params = [{transform_indices = @transform_0, window_bounds = array<i64: 8, 52>}, {pipeline_mode = #tpu.pipeline_mode<synchronous>, transform_indices = @transform_1, window_bounds = array<i64: 52, 32>}, {pipeline_mode = #tpu.pipeline_mode<synchronous>, transform_indices = @transform_2, window_bounds = array<i64: 1, 32>}, {pipeline_mode = #tpu.pipeline_mode<synchronous>, transform_indices = @transform_3, window_bounds = array<i64: 1, 32>}, {pipeline_mode = #tpu.pipeline_mode<synchronous>, transform_indices = @transform_4, window_bounds = array<i64: 32, 32>}, {pipeline_mode = #tpu.pipeline_mode<synchronous>, transform_indices = @transform_5, window_bounds = array<i64: 1, 32>}, {pipeline_mode = #tpu.pipeline_mode<synchronous>, transform_indices = @transform_6, window_bounds = array<i64: 1, 32>}, {pipeline_mode = #tpu.pipeline_mode<synchronous>, transform_indices = @transform_7, window_bounds = array<i64: 32, 128>}, {pipeline_mode = #tpu.pipeline_mode<synchronous>, transform_indices = @transform_8, window_bounds = array<i64: 1, 128>}, {transform_indices = @transform_9, window_bounds = array<i64: 8, 128>}]} {
    %c8_i32 = arith.constant 8 : i32
    %0 = arith.muli %arg1, %c8_i32 : i32
    %1 = tpu.assume_multiple %0, 8 : i32
    %c0_i32 = arith.constant 0 : i32
    %2 = arith.cmpi eq, %arg0, %c0_i32 : i32
    %3 = arith.extui %2 : i1 to i32
    %c0_i32_0 = arith.constant 0 : i32
    %4 = arith.cmpi ne, %3, %c0_i32_0 : i32
    scf.if %4 {
      %c0_i32_3 = arith.constant 0 : i32
      %11 = arith.cmpi eq, %arg1, %c0_i32_3 : i32
      %12 = arith.extui %11 : i1 to i32
      %c0_i32_4 = arith.constant 0 : i32
      %13 = arith.cmpi ne, %12, %c0_i32_4 : i32
      scf.if %13 {
        %cst_19 = arith.constant 0.000000e+00 : f32
        %31 = vector.broadcast %cst_19 : f32 to vector<1x32xf32>
        %c0_20 = arith.constant 0 : index
        %c0_21 = arith.constant 0 : index
        %32 = vector.load %arg12[%c0_20, %c0_21] : memref<1x32xf32, #tpu.memory_space<vmem>>, vector<1x32xf32>
        tpu.vector_store %arg12[%c0_20, %c0_21], %31 {strides = array<i32>} : memref<1x32xf32, #tpu.memory_space<vmem>>, vector<1x32xf32>,
        %cst_22 = arith.constant 0.000000e+00 : f32
        %33 = vector.broadcast %cst_22 : f32 to vector<1x32xf32>
        %c0_23 = arith.constant 0 : index
        %c0_24 = arith.constant 0 : index
        %34 = vector.load %arg13[%c0_23, %c0_24] : memref<1x32xf32, #tpu.memory_space<vmem>>, vector<1x32xf32>
        tpu.vector_store %arg13[%c0_23, %c0_24], %33 {strides = array<i32>} : memref<1x32xf32, #tpu.memory_space<vmem>>, vector<1x32xf32>,
        %cst_25 = arith.constant 0.000000e+00 : f32
        %35 = vector.broadcast %cst_25 : f32 to vector<1x32xf32>
        %c0_26 = arith.constant 0 : index
        %c0_27 = arith.constant 0 : index
        %36 = vector.load %arg14[%c0_26, %c0_27] : memref<1x32xf32, #tpu.memory_space<vmem>>, vector<1x32xf32>
        tpu.vector_store %arg14[%c0_26, %c0_27], %35 {strides = array<i32>} : memref<1x32xf32, #tpu.memory_space<vmem>>, vector<1x32xf32>,
        %cst_28 = arith.constant 0.000000e+00 : f32
        %37 = vector.broadcast %cst_28 : f32 to vector<1x32xf32>
        %c0_29 = arith.constant 0 : index
        %c0_30 = arith.constant 0 : index
        %38 = vector.load %arg15[%c0_29, %c0_30] : memref<1x32xf32, #tpu.memory_space<vmem>>, vector<1x32xf32>
        tpu.vector_store %arg15[%c0_29, %c0_30], %37 {strides = array<i32>} : memref<1x32xf32, #tpu.memory_space<vmem>>, vector<1x32xf32>,
      } else {
      }
      %c0 = arith.constant 0 : index
      %c0_5 = arith.constant 0 : index
      %14 = vector.load %arg2[%c0, %c0_5] : memref<8x52xf32, #tpu.memory_space<vmem>>, vector<8x52xf32>
      %15 = arith.truncf %14 : vector<8x52xf32> to vector<8x52xbf16>
      %c0_6 = arith.constant 0 : index
      %c0_7 = arith.constant 0 : index
      %16 = vector.load %arg3[%c0_6, %c0_7] : memref<52x32xbf16, #tpu.memory_space<vmem>>, vector<52x32xbf16>
      %cst = arith.constant dense<0.000000e+00> : vector<8x32xf32>
      %17 = tpu.matmul %15, %16, %cst {dimension_numbers = #tpu.dot_dimension_numbers<[1], [0], [0], [1], [0, 0, 1, 1], [], []>} : vector<8x52xbf16>, vector<52x32xbf16>, vector<8x32xf32> -> vector<8x32xf32>
      %18 = arith.index_cast %1 : i32 to index
      %c0_8 = arith.constant 0 : index
      %19 = vector.load %arg16[%18, %c0_8] : memref<8x32xf32, #tpu.memory_space<vmem>>, vector<8x32xf32>
      tpu.vector_store %arg16[%18, %c0_8], %17 {strides = array<i32>} : memref<8x32xf32, #tpu.memory_space<vmem>>, vector<8x32xf32>,
      %c0_9 = arith.constant 0 : index
      %c0_10 = arith.constant 0 : index
      %20 = vector.load %arg12[%c0_9, %c0_10] : memref<1x32xf32, #tpu.memory_space<vmem>>, vector<1x32xf32>
      %cst_11 = arith.constant dense<0.000000e+00> : vector<32xf32>
      %21 = vector.multi_reduction <add>, %17, %cst_11 [0] : vector<8x32xf32> to vector<32xf32>
      %22 = vector.shape_cast %21 : vector<32xf32> to vector<1x32xf32>
      %23 = arith.addf %20, %22 : vector<1x32xf32>
      %c0_12 = arith.constant 0 : index
      %c0_13 = arith.constant 0 : index
      %24 = vector.load %arg12[%c0_12, %c0_13] : memref<1x32xf32, #tpu.memory_space<vmem>>, vector<1x32xf32>
      tpu.vector_store %arg12[%c0_12, %c0_13], %23 {strides = array<i32>} : memref<1x32xf32, #tpu.memory_space<vmem>>, vector<1x32xf32>,
      %c0_14 = arith.constant 0 : index
      %c0_15 = arith.constant 0 : index
      %25 = vector.load %arg13[%c0_14, %c0_15] : memref<1x32xf32, #tpu.memory_space<vmem>>, vector<1x32xf32>
      %26 = arith.mulf %17, %17 : vector<8x32xf32>
      %cst_16 = arith.constant dense<0.000000e+00> : vector<32xf32>
      %27 = vector.multi_reduction <add>, %26, %cst_16 [0] : vector<8x32xf32> to vector<32xf32>
      %28 = vector.shape_cast %27 : vector<32xf32> to vector<1x32xf32>
      %29 = arith.addf %25, %28 : vector<1x32xf32>
      %c0_17 = arith.constant 0 : index
      %c0_18 = arith.constant 0 : index
      %30 = vector.load %arg13[%c0_17, %c0_18] : memref<1x32xf32, #tpu.memory_space<vmem>>, vector<1x32xf32>
      tpu.vector_store %arg13[%c0_17, %c0_18], %29 {strides = array<i32>} : memref<1x32xf32, #tpu.memory_space<vmem>>, vector<1x32xf32>,
    } else {
    }
    %c1_i32 = arith.constant 1 : i32
    %5 = arith.cmpi eq, %arg0, %c1_i32 : i32
    %6 = arith.extui %5 : i1 to i32
    %c0_i32_1 = arith.constant 0 : i32
    %7 = arith.cmpi ne, %6, %c0_i32_1 : i32
    scf.if %7 {
      %c0_i32_3 = arith.constant 0 : i32
      %11 = arith.cmpi eq, %arg1, %c0_i32_3 : i32
      %12 = arith.extui %11 : i1 to i32
      %c0_i32_4 = arith.constant 0 : i32
      %13 = arith.cmpi ne, %12, %c0_i32_4 : i32
      scf.if %13 {
        %c0_24 = arith.constant 0 : index
        %c0_25 = arith.constant 0 : index
        %43 = vector.load %arg12[%c0_24, %c0_25] : memref<1x32xf32, #tpu.memory_space<vmem>>, vector<1x32xf32>
        %cst_26 = arith.constant 1.250000e-01 : f32
        %44 = vector.broadcast %cst_26 : f32 to vector<1x32xf32>
        %45 = arith.mulf %43, %44 : vector<1x32xf32>
        %c0_27 = arith.constant 0 : index
        %c0_28 = arith.constant 0 : index
        %46 = vector.load %arg13[%c0_27, %c0_28] : memref<1x32xf32, #tpu.memory_space<vmem>>, vector<1x32xf32>
        %cst_29 = arith.constant 1.250000e-01 : f32
        %47 = vector.broadcast %cst_29 : f32 to vector<1x32xf32>
        %48 = arith.mulf %46, %47 : vector<1x32xf32>
        %49 = arith.mulf %45, %45 : vector<1x32xf32>
        %50 = arith.subf %48, %49 : vector<1x32xf32>
        %cst_30 = arith.constant 0.000000e+00 : f32
        %51 = vector.broadcast %cst_30 : f32 to vector<1x32xf32>
        %52 = arith.maximumf %50, %51 : vector<1x32xf32>
        %c0_31 = arith.constant 0 : index
        %c0_32 = arith.constant 0 : index
        %53 = vector.load %arg4[%c0_31, %c0_32] : memref<1x32xf32, #tpu.memory_space<vmem>>, vector<1x32xf32>
        %cst_33 = arith.constant 9.99999974E-6 : f32
        %54 = vector.broadcast %cst_33 : f32 to vector<1x32xf32>
        %55 = arith.addf %52, %54 : vector<1x32xf32>
        %56 = math.rsqrt %55 : vector<1x32xf32>
        %57 = arith.mulf %53, %56 : vector<1x32xf32>
        %c0_34 = arith.constant 0 : index
        %c0_35 = arith.constant 0 : index
        %58 = vector.load %arg12[%c0_34, %c0_35] : memref<1x32xf32, #tpu.memory_space<vmem>>, vector<1x32xf32>
        tpu.vector_store %arg12[%c0_34, %c0_35], %57 {strides = array<i32>} : memref<1x32xf32, #tpu.memory_space<vmem>>, vector<1x32xf32>,
        %c0_36 = arith.constant 0 : index
        %c0_37 = arith.constant 0 : index
        %59 = vector.load %arg5[%c0_36, %c0_37] : memref<1x32xf32, #tpu.memory_space<vmem>>, vector<1x32xf32>
        %60 = arith.mulf %45, %57 : vector<1x32xf32>
        %61 = arith.subf %59, %60 : vector<1x32xf32>
        %c0_38 = arith.constant 0 : index
        %c0_39 = arith.constant 0 : index
        %62 = vector.load %arg13[%c0_38, %c0_39] : memref<1x32xf32, #tpu.memory_space<vmem>>, vector<1x32xf32>
        tpu.vector_store %arg13[%c0_38, %c0_39], %61 {strides = array<i32>} : memref<1x32xf32, #tpu.memory_space<vmem>>, vector<1x32xf32>,
      } else {
      }
      %14 = arith.index_cast %1 : i32 to index
      %c0 = arith.constant 0 : index
      %15 = vector.load %arg16[%14, %c0] : memref<8x32xf32, #tpu.memory_space<vmem>>, vector<8x32xf32>
      %c0_5 = arith.constant 0 : index
      %c0_6 = arith.constant 0 : index
      %16 = vector.load %arg12[%c0_5, %c0_6] : memref<1x32xf32, #tpu.memory_space<vmem>>, vector<1x32xf32>
      %17 = vector.broadcast %16 : vector<1x32xf32> to vector<8x32xf32>
      %18 = arith.mulf %15, %17 : vector<8x32xf32>
      %c0_7 = arith.constant 0 : index
      %c0_8 = arith.constant 0 : index
      %19 = vector.load %arg13[%c0_7, %c0_8] : memref<1x32xf32, #tpu.memory_space<vmem>>, vector<1x32xf32>
      %20 = vector.broadcast %19 : vector<1x32xf32> to vector<8x32xf32>
      %21 = arith.addf %18, %20 : vector<8x32xf32>
      %cst = arith.constant 0.000000e+00 : f32
      %22 = vector.broadcast %cst : f32 to vector<8x32xf32>
      %23 = arith.cmpf ogt, %21, %22 : vector<8x32xf32>
      %cst_9 = arith.constant 0.00999999977 : f32
      %24 = vector.broadcast %cst_9 : f32 to vector<8x32xf32>
      %25 = arith.mulf %24, %21 : vector<8x32xf32>
      %26 = arith.select %23, %21, %25 : vector<8x32xi1>, vector<8x32xf32>
      %27 = arith.truncf %26 : vector<8x32xf32> to vector<8x32xbf16>
      %c0_10 = arith.constant 0 : index
      %c0_11 = arith.constant 0 : index
      %28 = vector.load %arg6[%c0_10, %c0_11] : memref<32x32xbf16, #tpu.memory_space<vmem>>, vector<32x32xbf16>
      %cst_12 = arith.constant dense<0.000000e+00> : vector<8x32xf32>
      %29 = tpu.matmul %27, %28, %cst_12 {dimension_numbers = #tpu.dot_dimension_numbers<[1], [0], [0], [1], [0, 0, 1, 1], [], []>} : vector<8x32xbf16>, vector<32x32xbf16>, vector<8x32xf32> -> vector<8x32xf32>
      %30 = arith.index_cast %1 : i32 to index
      %c0_13 = arith.constant 0 : index
      %31 = vector.load %arg17[%30, %c0_13] : memref<8x32xf32, #tpu.memory_space<vmem>>, vector<8x32xf32>
      tpu.vector_store %arg17[%30, %c0_13], %29 {strides = array<i32>} : memref<8x32xf32, #tpu.memory_space<vmem>>, vector<8x32xf32>,
      %c0_14 = arith.constant 0 : index
      %c0_15 = arith.constant 0 : index
      %32 = vector.load %arg14[%c0_14, %c0_15] : memref<1x32xf32, #tpu.memory_space<vmem>>, vector<1x32xf32>
      %cst_16 = arith.constant dense<0.000000e+00> : vector<32xf32>
      %33 = vector.multi_reduction <add>, %29, %cst_16 [0] : vector<8x32xf32> to vector<32xf32>
      %34 = vector.shape_cast %33 : vector<32xf32> to vector<1x32xf32>
      %35 = arith.addf %32, %34 : vector<1x32xf32>
      %c0_17 = arith.constant 0 : index
      %c0_18 = arith.constant 0 : index
      %36 = vector.load %arg14[%c0_17, %c0_18] : memref<1x32xf32, #tpu.memory_space<vmem>>, vector<1x32xf32>
      tpu.vector_store %arg14[%c0_17, %c0_18], %35 {strides = array<i32>} : memref<1x32xf32, #tpu.memory_space<vmem>>, vector<1x32xf32>,
      %c0_19 = arith.constant 0 : index
      %c0_20 = arith.constant 0 : index
      %37 = vector.load %arg15[%c0_19, %c0_20] : memref<1x32xf32, #tpu.memory_space<vmem>>, vector<1x32xf32>
      %38 = arith.mulf %29, %29 : vector<8x32xf32>
      %cst_21 = arith.constant dense<0.000000e+00> : vector<32xf32>
      %39 = vector.multi_reduction <add>, %38, %cst_21 [0] : vector<8x32xf32> to vector<32xf32>
      %40 = vector.shape_cast %39 : vector<32xf32> to vector<1x32xf32>
      %41 = arith.addf %37, %40 : vector<1x32xf32>
      %c0_22 = arith.constant 0 : index
      %c0_23 = arith.constant 0 : index
      %42 = vector.load %arg15[%c0_22, %c0_23] : memref<1x32xf32, #tpu.memory_space<vmem>>, vector<1x32xf32>
      tpu.vector_store %arg15[%c0_22, %c0_23], %41 {strides = array<i32>} : memref<1x32xf32, #tpu.memory_space<vmem>>, vector<1x32xf32>,
    } else {
    }
    %c2_i32 = arith.constant 2 : i32
    %8 = arith.cmpi eq, %arg0, %c2_i32 : i32
    %9 = arith.extui %8 : i1 to i32
    %c0_i32_2 = arith.constant 0 : i32
    %10 = arith.cmpi ne, %9, %c0_i32_2 : i32
    scf.if %10 {
      %c0_i32_3 = arith.constant 0 : i32
      %11 = arith.cmpi eq, %arg1, %c0_i32_3 : i32
      %12 = arith.extui %11 : i1 to i32
      %c0_i32_4 = arith.constant 0 : i32
      %13 = arith.cmpi ne, %12, %c0_i32_4 : i32
      scf.if %13 {
        %c0_17 = arith.constant 0 : index
        %c0_18 = arith.constant 0 : index
        %34 = vector.load %arg14[%c0_17, %c0_18] : memref<1x32xf32, #tpu.memory_space<vmem>>, vector<1x32xf32>
        %cst_19 = arith.constant 1.250000e-01 : f32
        %35 = vector.broadcast %cst_19 : f32 to vector<1x32xf32>
        %36 = arith.mulf %34, %35 : vector<1x32xf32>
        %c0_20 = arith.constant 0 : index
        %c0_21 = arith.constant 0 : index
        %37 = vector.load %arg15[%c0_20, %c0_21] : memref<1x32xf32, #tpu.memory_space<vmem>>, vector<1x32xf32>
        %cst_22 = arith.constant 1.250000e-01 : f32
        %38 = vector.broadcast %cst_22 : f32 to vector<1x32xf32>
        %39 = arith.mulf %37, %38 : vector<1x32xf32>
        %40 = arith.mulf %36, %36 : vector<1x32xf32>
        %41 = arith.subf %39, %40 : vector<1x32xf32>
        %cst_23 = arith.constant 0.000000e+00 : f32
        %42 = vector.broadcast %cst_23 : f32 to vector<1x32xf32>
        %43 = arith.maximumf %41, %42 : vector<1x32xf32>
        %c0_24 = arith.constant 0 : index
        %c0_25 = arith.constant 0 : index
        %44 = vector.load %arg7[%c0_24, %c0_25] : memref<1x32xf32, #tpu.memory_space<vmem>>, vector<1x32xf32>
        %cst_26 = arith.constant 9.99999974E-6 : f32
        %45 = vector.broadcast %cst_26 : f32 to vector<1x32xf32>
        %46 = arith.addf %43, %45 : vector<1x32xf32>
        %47 = math.rsqrt %46 : vector<1x32xf32>
        %48 = arith.mulf %44, %47 : vector<1x32xf32>
        %c0_27 = arith.constant 0 : index
        %c0_28 = arith.constant 0 : index
        %49 = vector.load %arg14[%c0_27, %c0_28] : memref<1x32xf32, #tpu.memory_space<vmem>>, vector<1x32xf32>
        tpu.vector_store %arg14[%c0_27, %c0_28], %48 {strides = array<i32>} : memref<1x32xf32, #tpu.memory_space<vmem>>, vector<1x32xf32>,
        %c0_29 = arith.constant 0 : index
        %c0_30 = arith.constant 0 : index
        %50 = vector.load %arg8[%c0_29, %c0_30] : memref<1x32xf32, #tpu.memory_space<vmem>>, vector<1x32xf32>
        %51 = arith.mulf %36, %48 : vector<1x32xf32>
        %52 = arith.subf %50, %51 : vector<1x32xf32>
        %c0_31 = arith.constant 0 : index
        %c0_32 = arith.constant 0 : index
        %53 = vector.load %arg15[%c0_31, %c0_32] : memref<1x32xf32, #tpu.memory_space<vmem>>, vector<1x32xf32>
        tpu.vector_store %arg15[%c0_31, %c0_32], %52 {strides = array<i32>} : memref<1x32xf32, #tpu.memory_space<vmem>>, vector<1x32xf32>,
      } else {
      }
      %14 = arith.index_cast %1 : i32 to index
      %c0 = arith.constant 0 : index
      %15 = vector.load %arg17[%14, %c0] : memref<8x32xf32, #tpu.memory_space<vmem>>, vector<8x32xf32>
      %c0_5 = arith.constant 0 : index
      %c0_6 = arith.constant 0 : index
      %16 = vector.load %arg14[%c0_5, %c0_6] : memref<1x32xf32, #tpu.memory_space<vmem>>, vector<1x32xf32>
      %17 = vector.broadcast %16 : vector<1x32xf32> to vector<8x32xf32>
      %18 = arith.mulf %15, %17 : vector<8x32xf32>
      %c0_7 = arith.constant 0 : index
      %c0_8 = arith.constant 0 : index
      %19 = vector.load %arg15[%c0_7, %c0_8] : memref<1x32xf32, #tpu.memory_space<vmem>>, vector<1x32xf32>
      %20 = vector.broadcast %19 : vector<1x32xf32> to vector<8x32xf32>
      %21 = arith.addf %18, %20 : vector<8x32xf32>
      %cst = arith.constant 0.000000e+00 : f32
      %22 = vector.broadcast %cst : f32 to vector<8x32xf32>
      %23 = arith.cmpf ogt, %21, %22 : vector<8x32xf32>
      %cst_9 = arith.constant 0.00999999977 : f32
      %24 = vector.broadcast %cst_9 : f32 to vector<8x32xf32>
      %25 = arith.mulf %24, %21 : vector<8x32xf32>
      %26 = arith.select %23, %21, %25 : vector<8x32xi1>, vector<8x32xf32>
      %27 = arith.truncf %26 : vector<8x32xf32> to vector<8x32xbf16>
      %c0_10 = arith.constant 0 : index
      %c0_11 = arith.constant 0 : index
      %28 = vector.load %arg9[%c0_10, %c0_11] : memref<32x128xbf16, #tpu.memory_space<vmem>>, vector<32x128xbf16>
      %cst_12 = arith.constant dense<0.000000e+00> : vector<8x128xf32>
      %29 = tpu.matmul %27, %28, %cst_12 {dimension_numbers = #tpu.dot_dimension_numbers<[1], [0], [0], [1], [0, 0, 1, 1], [], []>} : vector<8x32xbf16>, vector<32x128xbf16>, vector<8x128xf32> -> vector<8x128xf32>
      %c0_13 = arith.constant 0 : index
      %c0_14 = arith.constant 0 : index
      %30 = vector.load %arg10[%c0_13, %c0_14] : memref<1x128xf32, #tpu.memory_space<vmem>>, vector<1x128xf32>
      %31 = vector.broadcast %30 : vector<1x128xf32> to vector<8x128xf32>
      %32 = arith.addf %29, %31 : vector<8x128xf32>
      %c0_15 = arith.constant 0 : index
      %c0_16 = arith.constant 0 : index
      %33 = vector.load %arg11[%c0_15, %c0_16] : memref<8x128xf32, #tpu.memory_space<vmem>>, vector<8x128xf32>
      tpu.vector_store %arg11[%c0_15, %c0_16], %32 {strides = array<i32>} : memref<8x128xf32, #tpu.memory_space<vmem>>, vector<8x128xf32>,
    } else {
    }
    return
  }
  func.func @transform_0(%arg0: i32, %arg1: i32) -> (i32, i32) {
    %c0_i32 = arith.constant 0 : i32
    %0 = arith.cmpi eq, %arg0, %c0_i32 : i32
    %c0_i32_0 = arith.constant 0 : i32
    %1 = arith.select %0, %arg1, %c0_i32_0 : i32
    %c0_i32_1 = arith.constant 0 : i32
    %c0_i32_2 = arith.constant 0 : i32
    return %1, %c0_i32_1 : i32, i32
  }
  func.func @transform_1(%arg0: i32, %arg1: i32) -> (i32, i32) {
    %c0_i32 = arith.constant 0 : i32
    %c0_i32_0 = arith.constant 0 : i32
    %c0_i32_1 = arith.constant 0 : i32
    return %c0_i32, %c0_i32_0 : i32, i32
  }
  func.func @transform_2(%arg0: i32, %arg1: i32) -> (i32, i32) {
    %c0_i32 = arith.constant 0 : i32
    %c0_i32_0 = arith.constant 0 : i32
    %c0_i32_1 = arith.constant 0 : i32
    return %c0_i32, %c0_i32_0 : i32, i32
  }
  func.func @transform_3(%arg0: i32, %arg1: i32) -> (i32, i32) {
    %c0_i32 = arith.constant 0 : i32
    %c0_i32_0 = arith.constant 0 : i32
    %c0_i32_1 = arith.constant 0 : i32
    return %c0_i32, %c0_i32_0 : i32, i32
  }
  func.func @transform_4(%arg0: i32, %arg1: i32) -> (i32, i32) {
    %c0_i32 = arith.constant 0 : i32
    %c0_i32_0 = arith.constant 0 : i32
    %c0_i32_1 = arith.constant 0 : i32
    return %c0_i32, %c0_i32_0 : i32, i32
  }
  func.func @transform_5(%arg0: i32, %arg1: i32) -> (i32, i32) {
    %c0_i32 = arith.constant 0 : i32
    %c0_i32_0 = arith.constant 0 : i32
    %c0_i32_1 = arith.constant 0 : i32
    return %c0_i32, %c0_i32_0 : i32, i32
  }
  func.func @transform_6(%arg0: i32, %arg1: i32) -> (i32, i32) {
    %c0_i32 = arith.constant 0 : i32
    %c0_i32_0 = arith.constant 0 : i32
    %c0_i32_1 = arith.constant 0 : i32
    return %c0_i32, %c0_i32_0 : i32, i32
  }
  func.func @transform_7(%arg0: i32, %arg1: i32) -> (i32, i32) {
    %c0_i32 = arith.constant 0 : i32
    %c0_i32_0 = arith.constant 0 : i32
    %c0_i32_1 = arith.constant 0 : i32
    return %c0_i32, %c0_i32_0 : i32, i32
  }
  func.func @transform_8(%arg0: i32, %arg1: i32) -> (i32, i32) {
    %c0_i32 = arith.constant 0 : i32
    %c0_i32_0 = arith.constant 0 : i32
    %c0_i32_1 = arith.constant 0 : i32
    return %c0_i32, %c0_i32_0 : i32, i32
  }
  func.func @transform_9(%arg0: i32, %arg1: i32) -> (i32, i32) {
    %c2_i32 = arith.constant 2 : i32
    %0 = arith.cmpi eq, %arg0, %c2_i32 : i32
    %c0_i32 = arith.constant 0 : i32
    %1 = arith.select %0, %arg1, %c0_i32 : i32
    %c0_i32_0 = arith.constant 0 : i32
    %c0_i32_1 = arith.constant 0 : i32
    return %1, %c0_i32_0 : i32, i32
  }
}

</mosaic_0001>

<llo_original>
// kernel: tpu_custom_call.1
$region0: #{tpu_custom_call.1}
  #allocation0 [shape = 'u32[]', space=smem, size = 0x4, offset = 0x4, fixed_abs, tag = 'smem constant byte address 0x4 - core index']
  #allocation1 [shape = 'u32[144,128]{1,0:T(1,128)}', space=vmem, size = 0x12000, scoped, tag = 'internal scratch']
  #allocation2 [shape = 'f32[1,32]{1,0:T(1,128)}', space=vmem, size = 0x200, scoped, tag = 'scratch operand']
  #allocation3 [shape = 'f32[1,32]{1,0:T(1,128)}', space=vmem, size = 0x200, scoped, tag = 'scratch operand']
  #allocation4 [shape = 'f32[1,32]{1,0:T(1,128)}', space=vmem, size = 0x200, scoped, tag = 'scratch operand']
  #allocation5 [shape = 'f32[1,32]{1,0:T(1,128)}', space=vmem, size = 0x200, scoped, tag = 'scratch operand']
  #allocation6 [shape = 'f32[8,32]{1,0:T(8,128)}', space=vmem, size = 0x1000, scoped, tag = 'scratch operand']
  #allocation7 [shape = 'f32[8,32]{1,0:T(8,128)}', space=vmem, size = 0x1000, scoped, tag = 'scratch operand']
  %s0 = inlined_call_operand.vmem [shape: f32[8,52], index: 0, kind: input, shape index: {}]
  %s1 = inlined_call_operand.vmem [shape: bf16[52,32], index: 1, kind: input, shape index: {}]
  %s2 = inlined_call_operand.vmem [shape: f32[1,32], index: 2, kind: input, shape index: {}]
  %s3 = inlined_call_operand.vmem [shape: f32[1,32], index: 3, kind: input, shape index: {}]
  %s4 = inlined_call_operand.vmem [shape: bf16[32,32], index: 4, kind: input, shape index: {}]
  %s5 = inlined_call_operand.vmem [shape: f32[1,32], index: 5, kind: input, shape index: {}]
  %s6 = inlined_call_operand.vmem [shape: f32[1,32], index: 6, kind: input, shape index: {}]
  %s7 = inlined_call_operand.vmem [shape: bf16[32,128], index: 7, kind: input, shape index: {}]
  %s8 = inlined_call_operand.vmem [shape: f32[1,128], index: 8, kind: input, shape index: {}]
  %s9 = inlined_call_operand.hbm [shape: f32[8,128], index: 9, kind: output, shape index: {}]
  %s10 = sld [smem:[#allocation0]]
  $region93: #{tpu_custom_call.1} parent=0
    _
  %s12 = ssub.s32 1, %s10
  %s13 = scalar_select 0, %s12, %s10
  $region1: #{tpu_custom_call.1} parent=0
    #allocation8 [shape = 'u8[8192]{0}', space=vmem, size = 0x2000, scoped, tag = 'output window, operand 0']
    #allocation9 [shape = 's32[2]{0}', space=sflag, size = 0x8, scoped, tag = 'scoped memory for tpu_custom_call.1']
    %14 = vsyncpa [#allocation9], 0
    %s15 = scalar_lea.sflag [#allocation9], 1
    %16 = vsyncpa %s15, 0
    loop: start=0, step=1, limit=5
    $region2: #{tpu_custom_call.1} parent=1 // loop_pre_header
      _
    $region3: #{tpu_custom_call.1} parent=1 // loop_header
      %s18 = sphi 0, %s22
      %p19 = scmp.ge.s32.totalorder %s18, 5
      %s25 = sphi 0, %s37
      %s26 = sphi 0, %s33
      %s27 = sphi 0, %s25
      %s28 = sphi 0, %s26
      %s29 = sphi 0, %s27
      %s30 = sphi 0, %s28
      %s44 = sphi 0, %s46
      %s47 = sphi 0, %s44
      %s48 = sphi 0, %s47
      %s64 = sphi 0, %s48
      %s68 = sphi 0, %s68
      %s70 = sphi 0, %s68
      %s71 = sphi 0, %s70
      %s85 = sphi 0, %s71
      %s89 = sphi 0, %s89
      %s91 = sphi 0, %s89
      %s92 = sphi 0, %s91
      %s106 = sphi 0, %s92
      %s110 = sphi 0, %s110
      %s112 = sphi 0, %s110
      %s113 = sphi 0, %s112
      %s127 = sphi 0, %s113
      %s131 = sphi 0, %s131
      %s133 = sphi 0, %s131
      %s134 = sphi 0, %s133
      %s148 = sphi 0, %s134
      %s152 = sphi 0, %s152
      %s154 = sphi 0, %s152
      %s155 = sphi 0, %s154
      %s169 = sphi 0, %s155
      %s173 = sphi 0, %s173
      %s175 = sphi 0, %s173
      %s176 = sphi 0, %s175
      %s190 = sphi 0, %s176
      %s194 = sphi 0, %s194
      %s196 = sphi 0, %s194
      %s197 = sphi 0, %s196
      %s211 = sphi 0, %s197
      %s215 = sphi 0, %s215
      %s217 = sphi 0, %s215
      %s218 = sphi 0, %s217
      %s232 = sphi 0, %s218
      %s242 = sphi 0, %s244
      %s245 = sphi 0, %s242
      %s246 = sphi 0, %s245
      %s262 = sphi 0, %s246
    $region4: #{tpu_custom_call.1} parent=1 // loop_header_branch
      %21 = sbr.rel (%p19) target = $region8
    $region5: #{tpu_custom_call.1} parent=1 // loop_body
      %s23 = ssub.s32 %s18, 1
      %s24 = ssub.s32 %s18, 2
      %s31 = sadd.s32 1, %s26
      %p32 = scmp.ge.s32.totalorder %s31, 1
      %s33 = scalar_select %p32, 0, %s31
      %s34 = sadd.s32 1, %s25
      %s35 = scalar_select %p32, %s34, %s25
      %p36 = scmp.ge.s32.totalorder %s35, 3
      %s37 = scalar_select %p36, 0, %s35
      %p38 = scmp.eq.s32.totalorder %s25, 0
      %s39 = scalar_select %p38, %s26, 0
      %p40 = scmp.eq.s32.totalorder %s37, 0
      %s41 = scalar_select %p40, %s33, 0
      %s42 = ssub.s32 %s39, %s41
      %p43 = scmp.eq.s32.totalorder %s42, 0
      %s45 = sadd.s32 %s44, 1
      %s46 = scalar_select %p43, %s44, %s45
      %p49 = pneg %p43
      %p50 = scmp.eq.s32.totalorder %s18, 2
      %p51 = por %p49, %p50
      %p52 = scmp.ne.s32.totalorder %s44, %s47
      %p53 = scmp.eq.s32.totalorder %s18, 0
      %p54 = por %p52, %p53
      %p55 = scmp.ne.s32.totalorder %s44, %s47
      %p56 = scmp.eq.s32.totalorder %s23, 2
      %p57 = por %p55, %p56
      %p58 = scmp.ne.s32.totalorder %s47, %s48
      %p59 = scmp.eq.s32.totalorder %s23, 0
      %p60 = por %p58, %p59
      %p61 = scmp.ne.s32.totalorder %s47, %s48
      %p62 = scmp.eq.s32.totalorder %s24, 2
      %p63 = por %p61, %p62
      %p65 = scmp.ne.s32.totalorder %s48, %s64
      %p66 = scmp.eq.s32.totalorder %s24, 0
      %p67 = por %p65, %p66
      %s69 = sadd.s32 %s68, 1
      %p72 = scmp.eq.s32.totalorder %s18, 2
      %p73 = scmp.ne.s32.totalorder %s68, %s70
      %p74 = scmp.eq.s32.totalorder %s18, 0
      %p75 = por %p73, %p74
      %p76 = scmp.ne.s32.totalorder %s68, %s70
      %p77 = scmp.eq.s32.totalorder %s23, 2
      %p78 = por %p76, %p77
      %p79 = scmp.ne.s32.totalorder %s70, %s71
      %p80 = scmp.eq.s32.totalorder %s23, 0
      %p81 = por %p79, %p80
      %p82 = scmp.ne.s32.totalorder %s70, %s71
      %p83 = scmp.eq.s32.totalorder %s24, 2
      %p84 = por %p82, %p83
      %p86 = scmp.ne.s32.totalorder %s71, %s85
      %p87 = scmp.eq.s32.totalorder %s24, 0
      %p88 = por %p86, %p87
      %s90 = sadd.s32 %s89, 1
      %p93 = scmp.eq.s32.totalorder %s18, 2
      %p94 = scmp.ne.s32.totalorder %s89, %s91
      %p95 = scmp.eq.s32.totalorder %s18, 0
      %p96 = por %p94, %p95
      %p97 = scmp.ne.s32.totalorder %s89, %s91
      %p98 = scmp.eq.s32.totalorder %s23, 2
      %p99 = por %p97, %p98
      %p100 = scmp.ne.s32.totalorder %s91, %s92
      %p101 = scmp.eq.s32.totalorder %s23, 0
      %p102 = por %p100, %p101
      %p103 = scmp.ne.s32.totalorder %s91, %s92
      %p104 = scmp.eq.s32.totalorder %s24, 2
      %p105 = por %p103, %p104
      %p107 = scmp.ne.s32.totalorder %s92, %s106
      %p108 = scmp.eq.s32.totalorder %s24, 0
      %p109 = por %p107, %p108
      %s111 = sadd.s32 %s110, 1
      %p114 = scmp.eq.s32.totalorder %s18, 2
      %p115 = scmp.ne.s32.totalorder %s110, %s112
      %p116 = scmp.eq.s32.totalorder %s18, 0
      %p117 = por %p115, %p116
      %p118 = scmp.ne.s32.totalorder %s110, %s112
      %p119 = scmp.eq.s32.totalorder %s23, 2
      %p120 = por %p118, %p119
      %p121 = scmp.ne.s32.totalorder %s112, %s113
      %p122 = scmp.eq.s32.totalorder %s23, 0
      %p123 = por %p121, %p122
      %p124 = scmp.ne.s32.totalorder %s112, %s113
      %p125 = scmp.eq.s32.totalorder %s24, 2
      %p126 = por %p124, %p125
      %p128 = scmp.ne.s32.totalorder %s113, %s127
      %p129 = scmp.eq.s32.totalorder %s24, 0
      %p130 = por %p128, %p129
      %s132 = sadd.s32 %s131, 1
      %p135 = scmp.eq.s32.totalorder %s18, 2
      %p136 = scmp.ne.s32.totalorder %s131, %s133
      %p137 = scmp.eq.s32.totalorder %s18, 0
      %p138 = por %p136, %p137
      %p139 = scmp.ne.s32.totalorder %s131, %s133
      %p140 = scmp.eq.s32.totalorder %s23, 2
      %p141 = por %p139, %p140
      %p142 = scmp.ne.s32.totalorder %s133, %s134
      %p143 = scmp.eq.s32.totalorder %s23, 0
      %p144 = por %p142, %p143
      %p145 = scmp.ne.s32.totalorder %s133, %s134
      %p146 = scmp.eq.s32.totalorder %s24, 2
      %p147 = por %p145, %p146
      %p149 = scmp.ne.s32.totalorder %s134, %s148
      %p150 = scmp.eq.s32.totalorder %s24, 0
      %p151 = por %p149, %p150
      %s153 = sadd.s32 %s152, 1
      %p156 = scmp.eq.s32.totalorder %s18, 2
      %p157 = scmp.ne.s32.totalorder %s152, %s154
      %p158 = scmp.eq.s32.totalorder %s18, 0
      %p159 = por %p157, %p158
      %p160 = scmp.ne.s32.totalorder %s152, %s154
      %p161 = scmp.eq.s32.totalorder %s23, 2
      %p162 = por %p160, %p161
      %p163 = scmp.ne.s32.totalorder %s154, %s155
      %p164 = scmp.eq.s32.totalorder %s23, 0
      %p165 = por %p163, %p164
      %p166 = scmp.ne.s32.totalorder %s154, %s155
      %p167 = scmp.eq.s32.totalorder %s24, 2
      %p168 = por %p166, %p167
      %p170 = scmp.ne.s32.totalorder %s155, %s169
      %p171 = scmp.eq.s32.totalorder %s24, 0
      %p172 = por %p170, %p171
      %s174 = sadd.s32 %s173, 1
      %p177 = scmp.eq.s32.totalorder %s18, 2
      %p178 = scmp.ne.s32.totalorder %s173, %s175
      %p179 = scmp.eq.s32.totalorder %s18, 0
      %p180 = por %p178, %p179
      %p181 = scmp.ne.s32.totalorder %s173, %s175
      %p182 = scmp.eq.s32.totalorder %s23, 2
      %p183 = por %p181, %p182
      %p184 = scmp.ne.s32.totalorder %s175, %s176
      %p185 = scmp.eq.s32.totalorder %s23, 0
      %p186 = por %p184, %p185
      %p187 = scmp.ne.s32.totalorder %s175, %s176
      %p188 = scmp.eq.s32.totalorder %s24, 2
      %p189 = por %p187, %p188
      %p191 = scmp.ne.s32.totalorder %s176, %s190
      %p192 = scmp.eq.s32.totalorder %s24, 0
      %p193 = por %p191, %p192
      %s195 = sadd.s32 %s194, 1
      %p198 = scmp.eq.s32.totalorder %s18, 2
      %p199 = scmp.ne.s32.totalorder %s194, %s196
      %p200 = scmp.eq.s32.totalorder %s18, 0
      %p201 = por %p199, %p200
      %p202 = scmp.ne.s32.totalorder %s194, %s196
      %p203 = scmp.eq.s32.totalorder %s23, 2
      %p204 = por %p202, %p203
      %p205 = scmp.ne.s32.totalorder %s196, %s197
      %p206 = scmp.eq.s32.totalorder %s23, 0
      %p207 = por %p205, %p206
      %p208 = scmp.ne.s32.totalorder %s196, %s197
      %p209 = scmp.eq.s32.totalorder %s24, 2
      %p210 = por %p208, %p209
      %p212 = scmp.ne.s32.totalorder %s197, %s211
      %p213 = scmp.eq.s32.totalorder %s24, 0
      %p214 = por %p212, %p213
      %s216 = sadd.s32 %s215, 1
      %p219 = scmp.eq.s32.totalorder %s18, 2
      %p220 = scmp.ne.s32.totalorder %s215, %s217
      %p221 = scmp.eq.s32.totalorder %s18, 0
      %p222 = por %p220, %p221
      %p223 = scmp.ne.s32.totalorder %s215, %s217
      %p224 = scmp.eq.s32.totalorder %s23, 2
      %p225 = por %p223, %p224
      %p226 = scmp.ne.s32.totalorder %s217, %s218
      %p227 = scmp.eq.s32.totalorder %s23, 0
      %p228 = por %p226, %p227
      %p229 = scmp.ne.s32.totalorder %s217, %s218
      %p230 = scmp.eq.s32.totalorder %s24, 2
      %p231 = por %p229, %p230
      %p233 = scmp.ne.s32.totalorder %s218, %s232
      %p234 = scmp.eq.s32.totalorder %s24, 0
      %p235 = por %p233, %p234
      %p236 = scmp.eq.s32.totalorder %s25, 2
      %s237 = scalar_select %p236, %s26, 0
      %p238 = scmp.eq.s32.totalorder %s37, 2
      %s239 = scalar_select %p238, %s33, 0
      %s240 = ssub.s32 %s237, %s239
      %p241 = scmp.eq.s32.totalorder %s240, 0
      %s243 = sadd.s32 %s242, 1
      %s244 = scalar_select %p241, %s242, %s243
      %p247 = pneg %p241
      %p248 = scmp.eq.s32.totalorder %s18, 2
      %p249 = por %p247, %p248
      %p250 = scmp.ne.s32.totalorder %s242, %s245
      %p251 = scmp.eq.s32.totalorder %s18, 0
      %p252 = por %p250, %p251
      %p253 = scmp.ne.s32.totalorder %s242, %s245
      %p254 = scmp.eq.s32.totalorder %s23, 2
      %p255 = por %p253, %p254
      %p256 = scmp.ne.s32.totalorder %s245, %s246
      %p257 = scmp.eq.s32.totalorder %s23, 0
      %p258 = por %p256, %p257
      %p259 = scmp.ne.s32.totalorder %s245, %s246
      %p260 = scmp.eq.s32.totalorder %s24, 2
      %p261 = por %p259, %p260
      %p263 = scmp.ne.s32.totalorder %s246, %s262
      %p264 = scmp.eq.s32.totalorder %s24, 0
      %p265 = por %p263, %p264
      %p266 = scmp.le.s32.totalorder 1, %s18
      %p267 = scmp.lt.s32.totalorder %s18, 4
      %p268 = pnand %p266, %p267
      %p269 = pneg %p268
      // Predicated region
      $region9: #{tpu_custom_call.1} parent=5 // pred_check
        _
      $region10: #{tpu_custom_call.1} parent=5 // pred_check_branch
        %271 = sbr.rel (%p268) target = $region12
      $region11: #{tpu_custom_call.1} parent=5 // pred_region
        %s272 = ssub.s32 %s18, 1
        // Predicated region
        $region13: #{tpu_custom_call.1} parent=11 // pred_check
          %p273 = pneg %p81
        $region14: #{tpu_custom_call.1} parent=11 // pred_check_branch
          %275 = sbr.rel (%p273) target = $region16
        $region15: #{tpu_custom_call.1} parent=11 // pred_region
          _
        $region16: #{tpu_custom_call.1} parent=11 // pred_fallthru
          _
        // Predicated region
        $region17: #{tpu_custom_call.1} parent=11 // pred_check
          %p276 = pneg %p102
        $region18: #{tpu_custom_call.1} parent=11 // pred_check_branch
          %278 = sbr.rel (%p276) target = $region20
        $region19: #{tpu_custom_call.1} parent=11 // pred_region
          _
        $region20: #{tpu_custom_call.1} parent=11 // pred_fallthru
          _
        // Predicated region
        $region21: #{tpu_custom_call.1} parent=11 // pred_check
          %p279 = pneg %p123
        $region22: #{tpu_custom_call.1} parent=11 // pred_check_branch
          %281 = sbr.rel (%p279) target = $region24
        $region23: #{tpu_custom_call.1} parent=11 // pred_region
          _
        $region24: #{tpu_custom_call.1} parent=11 // pred_fallthru
          _
        // Predicated region
        $region25: #{tpu_custom_call.1} parent=11 // pred_check
          %p282 = pneg %p144
        $region26: #{tpu_custom_call.1} parent=11 // pred_check_branch
          %284 = sbr.rel (%p282) target = $region28
        $region27: #{tpu_custom_call.1} parent=11 // pred_region
          _
        $region28: #{tpu_custom_call.1} parent=11 // pred_fallthru
          _
        // Predicated region
        $region29: #{tpu_custom_call.1} parent=11 // pred_check
          %p285 = pneg %p165
        $region30: #{tpu_custom_call.1} parent=11 // pred_check_branch
          %287 = sbr.rel (%p285) target = $region32
        $region31: #{tpu_custom_call.1} parent=11 // pred_region
          _
        $region32: #{tpu_custom_call.1} parent=11 // pred_fallthru
          _
        // Predicated region
        $region33: #{tpu_custom_call.1} parent=11 // pred_check
          %p288 = pneg %p186
        $region34: #{tpu_custom_call.1} parent=11 // pred_check_branch
          %290 = sbr.rel (%p288) target = $region36
        $region35: #{tpu_custom_call.1} parent=11 // pred_region
          _
        $region36: #{tpu_custom_call.1} parent=11 // pred_fallthru
          _
        // Predicated region
        $region37: #{tpu_custom_call.1} parent=11 // pred_check
          %p291 = pneg %p207
        $region38: #{tpu_custom_call.1} parent=11 // pred_check_branch
          %293 = sbr.rel (%p291) target = $region40
        $region39: #{tpu_custom_call.1} parent=11 // pred_region
          _
        $region40: #{tpu_custom_call.1} parent=11 // pred_fallthru
          _
        // Predicated region
        $region41: #{tpu_custom_call.1} parent=11 // pred_check
          %p294 = pneg %p228
        $region42: #{tpu_custom_call.1} parent=11 // pred_check_branch
          %296 = sbr.rel (%p294) target = $region44
        $region43: #{tpu_custom_call.1} parent=11 // pred_region
          _
        $region44: #{tpu_custom_call.1} parent=11 // pred_fallthru
          _
      $region12: #{tpu_custom_call.1} parent=5 // pred_fallthru
        _
      %p297 = scmp.lt.s32.totalorder %s18, 3
      // Predicated region
      $region45: #{tpu_custom_call.1} parent=5 // pred_check
        %p298 = pneg %p297
      $region46: #{tpu_custom_call.1} parent=5 // pred_check_branch
        %300 = sbr.rel (%p298) target = $region48
      $region47: #{tpu_custom_call.1} parent=5 // pred_region
        // Predicated region
        $region49: #{tpu_custom_call.1} parent=47 // pred_check
          %p301 = pneg %p54
        $region50: #{tpu_custom_call.1} parent=47 // pred_check_branch
          %303 = sbr.rel (%p301) target = $region52
        $region51: #{tpu_custom_call.1} parent=47 // pred_region
          %p304 = scmp.eq.s32.totalorder %s25, 0
          %s305 = scalar_select %p304, %s26, 0
          %p306 = scmp.lt.s32.totalorder %s305, 0
          %s307 = scalar_select %p306, %s305, 0
          %s308 = smul.addr %s307, 8
          %s309 = scalar_lea.vmem %s0, %s308
          %p310 = scmp.eq.s32.totalorder %s25, 0
          %s311 = scalar_select %p310, %s26, 0
        $region52: #{tpu_custom_call.1} parent=47 // pred_fallthru
          _
      $region48: #{tpu_custom_call.1} parent=5 // pred_fallthru
        _
      %p312 = scmp.le.s32.totalorder 1, %s18
      %p313 = scmp.lt.s32.totalorder %s18, 4
      %p314 = pnand %p312, %p313
      %p315 = pneg %p314
      // Predicated region
      $region53: #{tpu_custom_call.1} parent=5 // pred_check
        _
      $region54: #{tpu_custom_call.1} parent=5 // pred_check_branch
        %317 = sbr.rel (%p314) target = $region56
      $region55: #{tpu_custom_call.1} parent=5 // pred_region
        %s318 = ssub.s32 %s18, 1
        %p319 = scmp.eq.s32.totalorder %s27, 0
        %s320 = scalar_select %p319, %s28, 0
        %p321 = scmp.lt.s32.totalorder %s320, 0
        %s322 = scalar_select %p321, %s320, 0
        %s323 = smul.addr %s322, 8
        %s324 = scalar_lea.vmem %s0, %s323
        %p325 = pneg %p60
        %p326 = pneg %p57
        %p327 = pneg %p81
        %p328 = pneg %p78
        %p329 = pneg %p102
        %p330 = pneg %p99
        %p331 = pneg %p123
        %p332 = pneg %p120
        %p333 = pneg %p144
        %p334 = pneg %p141
        %p335 = pneg %p165
        %p336 = pneg %p162
        %p337 = pneg %p186
        %p338 = pneg %p183
        %p339 = pneg %p207
        %p340 = pneg %p204
        %p341 = pneg %p228
        %p342 = pneg %p225
        %p343 = pneg %p258
        %p344 = pneg %p255
        %s345 = sand.u32 %s245, 1
        %s346 = scalar_lea.sflag [#allocation9], %s345
        %s347 = sand.u32 %s245, 1
        %s348 = smul.addr %s347, 8
        %s349 = scalar_lea.vmem [#allocation8], %s348
        %p350 = scmp.eq.s32.totalorder %s27, 0
        %s351 = scalar_select %p350, %s28, 0
        %p352 = scmp.lt.s32.totalorder %s351, 0
        %s353 = scalar_select %p352, %s351, 0
        %s354 = smul.addr %s353, 8
        %s355 = scalar_lea.vmem %s0, %s354
        %p356 = scmp.eq.s32.totalorder %s27, 0
        %s357 = scalar_select %p356, %s28, 0
        %p358 = scmp.eq.s32.totalorder %s27, 2
        %s359 = scalar_select %p358, %s28, 0
        %s361 = smul.u32 %s28, 8
        %p362 = scmp.eq.s32.totalorder %s27, 0
        // Predicated region
        $region57: #{tpu_custom_call.1} parent=55 // pred_check
          %p363 = pneg %p362
        $region58: #{tpu_custom_call.1} parent=55 // pred_check_branch
          %365 = sbr.rel (%p363) target = $region60
        $region59: #{tpu_custom_call.1} parent=55 // pred_region
          %p366 = scmp.eq.s32.totalorder %s28, 0
          // Predicated region
          $region61: #{tpu_custom_call.1} parent=59 // pred_check
            %p367 = pneg %p366
          $region62: #{tpu_custom_call.1} parent=59 // pred_check_branch
            %369 = sbr.rel (%p367) target = $region64
          $region63: #{tpu_custom_call.1} parent=59 // pred_region
            %vm370 = vcmask 253952
            %371 = vst.msk [vmem:[#allocation2] sm:$0x1] %vm370, 0.0
            %372 = vst.msk [vmem:[#allocation3] sm:$0x1] %vm370, 0.0
            %373 = vst.msk [vmem:[#allocation4] sm:$0x1] %vm370, 0.0
            %374 = vst.msk [vmem:[#allocation5] sm:$0x1] %vm370, 0.0
          $region64: #{tpu_custom_call.1} parent=59 // pred_fallthru
            _
          %v375 = vld [vmem:[%s355] sm:$0xff]
          %v376 = vpack.c.bf16 %v375, %v375
          %v377 = vld [vmem:[%s1] sm:$0xf]
          %v378 = vld [vmem:[%s1 + $0x4] sm:$0xf]
          %v379 = vld [vmem:[%s1 + $0x8] sm:$0xf]
          %v380 = vld [vmem:[%s1 + $0xc] sm:$0xf]
          %v381 = vld [vmem:[%s1 + $0x10] sm:$0xf]
          %v382 = vld [vmem:[%s1 + $0x14] sm:$0xf]
          %v383 = vld [vmem:[%s1 + $0x18] sm:$0x3]
          %v391 = vunpack.c.l.b16 %v377
          %v392 = vunpack.c.l.b16 %v378
          %v393 = vunpack.c.l.b16 %v379
          %v394 = vunpack.c.l.b16 %v380
          %v395 = vunpack.c.l.b16 %v381
          %v396 = vunpack.c.l.b16 %v382
          %v397 = vunpack.c.l.b16 %v383
          %v398 = vpack.c.b16 %v392, %v391
          %v399 = vpack.c.b16 %v394, %v393
          %v400 = vpack.c.b16 %v396, %v395
          %v401 = vpack.c.b16 %v397, %v397
          %vm405 = vcmask 424960
          %v407 = vsel %vm405, %v376, 0
          %vm409 = vcmask 1041408
          %v411 = vsel %vm409, %v401, 0
          %413 = vmatprep.subr.bf16.mxu0 0
          %414 = vmatpush1.bf16.msra.mxu0 0
          %415 = vmatprep.subr.bf16.mxu0 0
          %416 = vmatpush1.bf16.msra.mxu0 0
          %417 = vmatprep.subr.bf16.mxu0 0
          %418 = vmatpush1.bf16.msra.mxu0 0
          %419 = vmatprep.subr.bf16.mxu0 0
          %420 = vmatpush1.bf16.msra.mxu0 0
          %421 = vmatprep.subr.bf16.mxu0 0
          %422 = vmatpush1.bf16.msra.mxu0 %v411
          %423 = vmatprep.subr.bf16.mxu0 0
          %424 = vmatpush1.bf16.msra.mxu0 %v400
          %425 = vmatprep.subr.bf16.mxu0 0
          %426 = vmatpush1.bf16.msra.mxu0 %v399
          %427 = vmatprep.subr.bf16.mxu0 0
          %428 = vmatpush1.bf16.msra.mxu0 %v398
          %429 = vmatprep.subr.bf16.mxu0 0
          %430 = vmatpush2.bf16.msra.mxu0 0
          %431 = vmatprep.subr.bf16.mxu0 0
          %432 = vmatpush2.bf16.msra.mxu0 0
          %433 = vmatprep.subr.bf16.mxu0 0
          %434 = vmatpush2.bf16.msra.mxu0 0
          %435 = vmatprep.subr.bf16.mxu0 0
          %436 = vmatpush2.bf16.msra.mxu0 0
          %437 = vmatprep.subr.bf16.mxu0 0
          %438 = vmatpush2.bf16.msra.mxu0 0
          %439 = vmatprep.subr.bf16.mxu0 0
          %440 = vmatpush2.bf16.msra.mxu0 0
          %441 = vmatprep.subr.bf16.mxu0 0
          %442 = vmatpush2.bf16.msra.mxu0 0
          %443 = vmatprep.subr.bf16.mxu0 0
          %444 = vmatpush2.bf16.msra.mxu0 0
          %445 = vmatprep.mubr.bf16.mxu0 0
          %446 = vmatmul.mubr.bf16.gmra.mxu0 %v407
          %v447 = vpop.f32.mrf.mxu0
          %v448 = vadd.f32 0.0, %v447
          %v449 = vpop.f32.mrf.mxu0
          %v450 = vpop.f32.mrf.mxu0
          %v451 = vpop.f32.mrf.mxu0
          %452 = vdwg.mxu0
          %s453 = scalar_lea.vmem [#allocation6], %s361
          %vm454 = vcmask 261120
          %455 = vst.msk [vmem:[%s453] sm:$0xff] %vm454, %v448
          %v456 = vld [vmem:[#allocation2] sm:$0x1]
          %v457 = vsel %vm454, %v448, 0.0
          %v458 = vrot.slane %v457, 4
          %v459 = vadd.f32 %v457, %v458
          %v460 = vrot.slane %v459, 2
          %v461 = vadd.f32 %v459, %v460
          %v462 = vrot.slane %v461, 1
          %v463 = vadd.f32 %v461, %v462
          %v464 = vadd.f32 %v456, %v463
          %vm465 = vcmask 253952
          %466 = vst.msk [vmem:[#allocation2] sm:$0x1] %vm465, %v464
          %v467 = vld [vmem:[#allocation3] sm:$0x1]
          %v468 = vmul.f32 %v448, %v448
          %v469 = vsel %vm454, %v468, 0.0
          %v470 = vrot.slane %v469, 4
          %v471 = vadd.f32 %v469, %v470
          %v472 = vrot.slane %v471, 2
          %v473 = vadd.f32 %v471, %v472
          %v474 = vrot.slane %v473, 1
          %v475 = vadd.f32 %v473, %v474
          %v476 = vadd.f32 %v467, %v475
          %477 = vst.msk [vmem:[#allocation3] sm:$0x1] %vm465, %v476
        $region60: #{tpu_custom_call.1} parent=55 // pred_fallthru
          _
        %p478 = scmp.eq.s32.totalorder %s27, 1
        // Predicated region
        $region65: #{tpu_custom_call.1} parent=55 // pred_check
          %p479 = pneg %p478
        $region66: #{tpu_custom_call.1} parent=55 // pred_check_branch
          %481 = sbr.rel (%p479) target = $region68
        $region67: #{tpu_custom_call.1} parent=55 // pred_region
          %p482 = scmp.eq.s32.totalorder %s28, 0
          // Predicated region
          $region69: #{tpu_custom_call.1} parent=67 // pred_check
            %p483 = pneg %p482
          $region70: #{tpu_custom_call.1} parent=67 // pred_check_branch
            %485 = sbr.rel (%p483) target = $region72
          $region71: #{tpu_custom_call.1} parent=67 // pred_region
            %v486 = vld [vmem:[#allocation2] sm:$0x1]
            %v487 = vmul.f32 %v486, 0.125
            %v488 = vld [vmem:[#allocation3] sm:$0x1]
            %v489 = vmul.f32 %v488, 0.125
            %v490 = vmul.f32 %v487, %v487
            %v491 = vsub.f32 %v489, %v490
            %v492 = vmax.f32 %v491, 0.0
            %v493 = vld [vmem:[%s2] sm:$0x1]
            %v494 = vadd.f32 %v492, 1e-05
            %v495 = vrsqrt.pop %v494
            %v496 = vmul.f32 %v493, %v495
            %vm497 = vcmask 253952
            %498 = vst.msk [vmem:[#allocation2] sm:$0x1] %vm497, %v496
            %v499 = vld [vmem:[%s3] sm:$0x1]
            %v500 = vmul.f32 %v487, %v496
            %v501 = vsub.f32 %v499, %v500
            %502 = vst.msk [vmem:[#allocation3] sm:$0x1] %vm497, %v501
          $region72: #{tpu_custom_call.1} parent=67 // pred_fallthru
            _
          %s503 = scalar_lea.vmem [#allocation6], %s361
          %v504 = vld [vmem:[%s503] sm:$0xff]
          %v505 = vld [vmem:[#allocation2] sm:$0x1]
          %v507 = vlaneseq
          %v508 = vshrl.u32 %v507, 7
          %v509 = vsub.s32 0, %v508
          %v510 = vrot.slane %v505, %v509
          %v512 = vmul.f32 %v504, %v510
          %v513 = vld [vmem:[#allocation3] sm:$0x1]
          %v515 = vlaneseq
          %v516 = vshrl.u32 %v515, 7
          %v517 = vsub.s32 0, %v516
          %v518 = vrot.slane %v513, %v517
          %v520 = vadd.f32 %v512, %v518
          %vm521 = vcmp.gt.f32.partialorder %v520, 0.0
          %v522 = vmul.f32 %v520, 0.01
          %v523 = vsel %vm521, %v520, %v522
          %v524 = vpack.c.bf16 %v523, %v523
          %v525 = vld [vmem:[%s4] sm:$0xf]
          %v526 = vld [vmem:[%s4 + $0x4] sm:$0xf]
          %v527 = vld [vmem:[%s4 + $0x8] sm:$0xf]
          %v528 = vld [vmem:[%s4 + $0xc] sm:$0xf]
          %v533 = vunpack.c.l.b16 %v525
          %v534 = vunpack.c.l.b16 %v526
          %v535 = vunpack.c.l.b16 %v527
          %v536 = vunpack.c.l.b16 %v528
          %v537 = vpack.c.b16 %v534, %v533
          %v538 = vpack.c.b16 %v536, %v535
          %vm541 = vcmask 261120
          %v543 = vsel %vm541, %v524, 0
          %545 = vmatprep.subr.bf16.mxu0 0
          %546 = vmatpush1.bf16.msra.mxu0 0
          %547 = vmatprep.subr.bf16.mxu0 0
          %548 = vmatpush1.bf16.msra.mxu0 0
          %549 = vmatprep.subr.bf16.mxu0 0
          %550 = vmatpush1.bf16.msra.mxu0 0
          %551 = vmatprep.subr.bf16.mxu0 0
          %552 = vmatpush1.bf16.msra.mxu0 0
          %553 = vmatprep.subr.bf16.mxu0 0
          %554 = vmatpush1.bf16.msra.mxu0 0
          %555 = vmatprep.subr.bf16.mxu0 0
          %556 = vmatpush1.bf16.msra.mxu0 0
          %557 = vmatprep.subr.bf16.mxu0 0
          %558 = vmatpush1.bf16.msra.mxu0 %v538
          %559 = vmatprep.subr.bf16.mxu0 0
          %560 = vmatpush1.bf16.msra.mxu0 %v537
          %561 = vmatprep.subr.bf16.mxu0 0
          %562 = vmatpush2.bf16.msra.mxu0 0
          %563 = vmatprep.subr.bf16.mxu0 0
          %564 = vmatpush2.bf16.msra.mxu0 0
          %565 = vmatprep.subr.bf16.mxu0 0
          %566 = vmatpush2.bf16.msra.mxu0 0
          %567 = vmatprep.subr.bf16.mxu0 0
          %568 = vmatpush2.bf16.msra.mxu0 0
          %569 = vmatprep.subr.bf16.mxu0 0
          %570 = vmatpush2.bf16.msra.mxu0 0
          %571 = vmatprep.subr.bf16.mxu0 0
          %572 = vmatpush2.bf16.msra.mxu0 0
          %573 = vmatprep.subr.bf16.mxu0 0
          %574 = vmatpush2.bf16.msra.mxu0 0
          %575 = vmatprep.subr.bf16.mxu0 0
          %576 = vmatpush2.bf16.msra.mxu0 0
          %577 = vmatprep.mubr.bf16.mxu0 0
          %578 = vmatmul.mubr.bf16.gmra.mxu0 %v543
          %v579 = vpop.f32.mrf.mxu0
          %v580 = vadd.f32 0.0, %v579
          %v581 = vpop.f32.mrf.mxu0
          %v582 = vpop.f32.mrf.mxu0
          %v583 = vpop.f32.mrf.mxu0
          %584 = vdwg.mxu0
          %s585 = scalar_lea.vmem [#allocation7], %s361
          %586 = vst.msk [vmem:[%s585] sm:$0xff] %vm541, %v580
          %v587 = vld [vmem:[#allocation4] sm:$0x1]
          %v588 = vsel %vm541, %v580, 0.0
          %v589 = vrot.slane %v588, 4
          %v590 = vadd.f32 %v588, %v589
          %v591 = vrot.slane %v590, 2
          %v592 = vadd.f32 %v590, %v591
          %v593 = vrot.slane %v592, 1
          %v594 = vadd.f32 %v592, %v593
          %v595 = vadd.f32 %v587, %v594
          %vm596 = vcmask 253952
          %597 = vst.msk [vmem:[#allocation4] sm:$0x1] %vm596, %v595
          %v598 = vld [vmem:[#allocation5] sm:$0x1]
          %v599 = vmul.f32 %v580, %v580
          %v600 = vsel %vm541, %v599, 0.0
          %v601 = vrot.slane %v600, 4
          %v602 = vadd.f32 %v600, %v601
          %v603 = vrot.slane %v602, 2
          %v604 = vadd.f32 %v602, %v603
          %v605 = vrot.slane %v604, 1
          %v606 = vadd.f32 %v604, %v605
          %v607 = vadd.f32 %v598, %v606
          %608 = vst.msk [vmem:[#allocation5] sm:$0x1] %vm596, %v607
        $region68: #{tpu_custom_call.1} parent=55 // pred_fallthru
          _
        %p609 = scmp.eq.s32.totalorder %s27, 2
        // Predicated region
        $region73: #{tpu_custom_call.1} parent=55 // pred_check
          %p610 = pneg %p609
        $region74: #{tpu_custom_call.1} parent=55 // pred_check_branch
          %612 = sbr.rel (%p610) target = $region76
        $region75: #{tpu_custom_call.1} parent=55 // pred_region
          %p613 = scmp.eq.s32.totalorder %s28, 0
          // Predicated region
          $region77: #{tpu_custom_call.1} parent=75 // pred_check
            %p614 = pneg %p613
          $region78: #{tpu_custom_call.1} parent=75 // pred_check_branch
            %616 = sbr.rel (%p614) target = $region80
          $region79: #{tpu_custom_call.1} parent=75 // pred_region
            %v617 = vld [vmem:[#allocation4] sm:$0x1]
            %v618 = vmul.f32 %v617, 0.125
            %v619 = vld [vmem:[#allocation5] sm:$0x1]
            %v620 = vmul.f32 %v619, 0.125
            %v621 = vmul.f32 %v618, %v618
            %v622 = vsub.f32 %v620, %v621
            %v623 = vmax.f32 %v622, 0.0
            %v624 = vld [vmem:[%s5] sm:$0x1]
            %v625 = vadd.f32 %v623, 1e-05
            %v626 = vrsqrt.pop %v625
            %v627 = vmul.f32 %v624, %v626
            %vm628 = vcmask 253952
            %629 = vst.msk [vmem:[#allocation4] sm:$0x1] %vm628, %v627
            %v630 = vld [vmem:[%s6] sm:$0x1]
            %v631 = vmul.f32 %v618, %v627
            %v632 = vsub.f32 %v630, %v631
            %633 = vst.msk [vmem:[#allocation5] sm:$0x1] %vm628, %v632
          $region80: #{tpu_custom_call.1} parent=75 // pred_fallthru
            _
          %s634 = scalar_lea.vmem [#allocation7], %s361
          %v635 = vld [vmem:[%s634] sm:$0xff]
          %v636 = vld [vmem:[#allocation4] sm:$0x1]
          %v638 = vlaneseq
          %v639 = vshrl.u32 %v638, 7
          %v640 = vsub.s32 0, %v639
          %v641 = vrot.slane %v636, %v640
          %v643 = vmul.f32 %v635, %v641
          %v644 = vld [vmem:[#allocation5] sm:$0x1]
          %v646 = vlaneseq
          %v647 = vshrl.u32 %v646, 7
          %v648 = vsub.s32 0, %v647
          %v649 = vrot.slane %v644, %v648
          %v651 = vadd.f32 %v643, %v649
          %vm652 = vcmp.gt.f32.partialorder %v651, 0.0
          %v653 = vmul.f32 %v651, 0.01
          %v654 = vsel %vm652, %v651, %v653
          %v655 = vpack.c.bf16 %v654, %v654
          %v656 = vld [vmem:[%s7] sm:$0xf]
          %v657 = vld [vmem:[%s7 + $0x4] sm:$0xf]
          %v658 = vld [vmem:[%s7 + $0x8] sm:$0xf]
          %v659 = vld [vmem:[%s7 + $0xc] sm:$0xf]
          %v660 = vld [vmem:[%s8] sm:$0x1]
          %v662 = vlaneseq
          %v663 = vshrl.u32 %v662, 7
          %v664 = vsub.s32 0, %v663
          %v665 = vrot.slane %v660, %v664
          %v671 = vunpack.c.l.b16 %v656
          %v672 = vunpack.c.l.b16 %v657
          %v673 = vunpack.c.l.b16 %v658
          %v674 = vunpack.c.l.b16 %v659
          %v675 = vpack.c.b16 %v672, %v671
          %v676 = vpack.c.b16 %v674, %v673
          %vm679 = vcmask 261120
          %v681 = vsel %vm679, %v655, 0
          %683 = vmatprep.subr.bf16.mxu0 0
          %684 = vmatpush1.bf16.msra.mxu0 0
          %685 = vmatprep.subr.bf16.mxu0 0
          %686 = vmatpush1.bf16.msra.mxu0 0
          %687 = vmatprep.subr.bf16.mxu0 0
          %688 = vmatpush1.bf16.msra.mxu0 0
          %689 = vmatprep.subr.bf16.mxu0 0
          %690 = vmatpush1.bf16.msra.mxu0 0
          %691 = vmatprep.subr.bf16.mxu0 0
          %692 = vmatpush1.bf16.msra.mxu0 0
          %693 = vmatprep.subr.bf16.mxu0 0
          %694 = vmatpush1.bf16.msra.mxu0 0
          %695 = vmatprep.subr.bf16.mxu0 0
          %696 = vmatpush1.bf16.msra.mxu0 %v676
          %697 = vmatprep.subr.bf16.mxu0 0
          %698 = vmatpush1.bf16.msra.mxu0 %v675
          %699 = vmatprep.subr.bf16.mxu0 0
          %700 = vmatpush2.bf16.msra.mxu0 0
          %701 = vmatprep.subr.bf16.mxu0 0
          %702 = vmatpush2.bf16.msra.mxu0 0
          %703 = vmatprep.subr.bf16.mxu0 0
          %704 = vmatpush2.bf16.msra.mxu0 0
          %705 = vmatprep.subr.bf16.mxu0 0
          %706 = vmatpush2.bf16.msra.mxu0 0
          %707 = vmatprep.subr.bf16.mxu0 0
          %708 = vmatpush2.bf16.msra.mxu0 0
          %709 = vmatprep.subr.bf16.mxu0 0
          %710 = vmatpush2.bf16.msra.mxu0 0
          %711 = vmatprep.subr.bf16.mxu0 0
          %712 = vmatpush2.bf16.msra.mxu0 0
          %713 = vmatprep.subr.bf16.mxu0 0
          %714 = vmatpush2.bf16.msra.mxu0 0
          %715 = vmatprep.mubr.bf16.mxu0 0
          %716 = vmatmul.mubr.bf16.gmra.mxu0 %v681
          %v717 = vpop.f32.mrf.mxu0
          %v718 = vadd.f32 %v665, %v717
          %v719 = vpop.f32.mrf.mxu0
          %v720 = vpop.f32.mrf.mxu0
          %v721 = vpop.f32.mrf.mxu0
          %722 = vdwg.mxu0
          %723 = vst [vmem:[%s349] sm:$0xff] %v718
        $region76: #{tpu_custom_call.1} parent=55 // pred_fallthru
          _
        %s724 = sand.u32 %s245, 1
        %s725 = scalar_lea.sflag [#allocation9], %s724
        %s726 = sand.u32 %s245, 1
        %s727 = smul.addr %s726, 8
        %s728 = scalar_lea.vmem [#allocation8], %s727
        // Predicated region
        $region81: #{tpu_custom_call.1} parent=55 // pred_check
          %p729 = pneg %p255
        $region82: #{tpu_custom_call.1} parent=55 // pred_check_branch
          %731 = sbr.rel (%p729) target = $region84
        $region83: #{tpu_custom_call.1} parent=55 // pred_region
          %p732 = scmp.eq.s32.totalorder %s27, 2
          %s733 = scalar_select %p732, %s28, 0
          %s735 = ssub.s32 128, 128
          %736 = vsyncadd %s725, %s735
          %s737 = smul.addr %s733, 128
          %s738 = scalar_lea.hbm %s9, %s737
          %s740 = sshll.u32 %s728, 4
          %s741 = int_to_ptr.vmem [resolvable:$true] %s740
          %743 = dma.vmem_to_hbm [thread:$0]  %s741, 128, %s738, %s725
        $region84: #{tpu_custom_call.1} parent=55 // pred_fallthru
          _
      $region56: #{tpu_custom_call.1} parent=5 // pred_fallthru
        _
      %p744 = scmp.le.s32.totalorder 2, %s18
      // Predicated region
      $region85: #{tpu_custom_call.1} parent=5 // pred_check
        %p745 = pneg %p744
      $region86: #{tpu_custom_call.1} parent=5 // pred_check_branch
        %747 = sbr.rel (%p745) target = $region88
      $region87: #{tpu_custom_call.1} parent=5 // pred_region
        %s748 = ssub.s32 %s18, 2
        // Predicated region
        $region89: #{tpu_custom_call.1} parent=87 // pred_check
          %p749 = pneg %p261
        $region90: #{tpu_custom_call.1} parent=87 // pred_check_branch
          %751 = sbr.rel (%p749) target = $region92
        $region91: #{tpu_custom_call.1} parent=87 // pred_region
          %s752 = sand.u32 %s246, 1
          %s753 = scalar_lea.sflag [#allocation9], %s752
          %s754 = sand.u32 %s246, 1
          %s755 = smul.addr %s754, 8
          %s756 = scalar_lea.vmem [#allocation8], %s755
          %757 = dma.done %s753, 128
        $region92: #{tpu_custom_call.1} parent=87 // pred_fallthru
          _
      $region88: #{tpu_custom_call.1} parent=5 // pred_fallthru
        _
    $region6: #{tpu_custom_call.1} parent=1 // loop_footer
      %s22 = sadd.s32 1, %s18
    $region7: #{tpu_custom_call.1} parent=1 // loop_footer_branch
      %17 = sbr.rel target = $region3
    $region8: #{tpu_custom_call.1} parent=1 // loop_exit
      _
    %758 = vsyncpa [#allocation9], 1
    %s759 = scalar_lea.sflag [#allocation9], 1
    %760 = vsyncpa %s759, 1

</llo_original>
